<compile_context>
chip_gen: v7x
topology: tpu7x:2x2x1
jax: 0.10.0
libtpu: 0.0.40
codegen_flags: <defaults>
</compile_context>

<pallas_src>
import functools
import math

import jax
import jax.numpy as jnp
from jax.experimental import pallas as pl
from jax.experimental.pallas import tpu as pltpu

EMBED_DIM = 64
KSIZE = 3
LANE = 128


def _time_embedding_vec(t):
    """(64,) sinusoidal embedding, identical to the PyTorch time_encoding()."""
    half = EMBED_DIM // 2
    scale = math.log(100.0) / (half - 1)
    freqs = jnp.exp(jnp.arange(half, dtype=jnp.float32) * -scale)
    ang = freqs * jnp.asarray(t, jnp.float32)
    return jnp.concatenate([jnp.sin(ang), jnp.cos(ang)])


def _time_encoding_nchw(t, batch_size, H, W, dtype=jnp.float32):
    emb = _time_embedding_vec(t).reshape(1, EMBED_DIM, 1, 1)
    return jnp.broadcast_to(emb, (batch_size, EMBED_DIM, H, W)).astype(dtype)


# pltpu.roll is used for the kh tap alignment.  We rely on jnp.roll semantics
# (out[i] = in[i - shift]); a tiny one-time single-vreg probe pins the shift
# convention down so the sign is robust, and the result is cached.
_ROLL_LIKE_JNP = None


def _roll_like_jnp_roll():
    global _ROLL_LIKE_JNP
    if _ROLL_LIKE_JNP is None:
        def probe(x_ref, o_ref):
            o_ref[...] = pltpu.roll(x_ref[...], 1, axis=0)

        with jax.ensure_compile_time_eval():
            x = jnp.arange(8 * 128, dtype=jnp.float32).reshape(8, 128)
            y = pl.pallas_call(
                probe, out_shape=jax.ShapeDtypeStruct((8, 128), jnp.float32))(x)
            _ROLL_LIKE_JNP = bool(jnp.array_equal(y, jnp.roll(x, 1, axis=0)))
    return _ROLL_LIKE_JNP


def _conv3x3_valid_kernel(x_ref, w_ref, b_ref, o_ref, *, roll_like_jnp):
    # x_ref: (M, 3*Cin)     flattened (bb, H, W) rows; channel j = kw*Cin + c
    #                       already holds x[b, h, w + kw, c] (zero past the edge).
    # w_ref: (3, 3*Cin, CP) per-kh weight slab, Cout zero-padded to CP = 128.
    # b_ref: (1, CP)        effective bias (time channels already folded in).
    # o_ref: (bb, Ho, Wo, CP)
    bb, Ho, Wo, CP = o_ref.shape
    H = Ho + KSIZE - 1
    W = Wo + KSIZE - 1
    M = x_ref.shape[0]

    x = x_ref[...]
    acc = jnp.zeros((M, CP), jnp.float32)
    for kh in range(KSIZE):
        # One MXU matmul per kh row over the whole flattened block (K = 3*Cin).
        y = jnp.dot(x, w_ref[kh],
                    preferred_element_type=jnp.float32,
                    precision=jax.lax.Precision.HIGHEST)          # (M, CP)
        d = kh * W
        if d:
            # Output row r needs y[r + d]: align with a sublane roll (XLU slot,
            # runs under the MXU work) instead of a strided-slice relayout.
            # Wrapped / cross-image rows only land in the invalid region
            # (ho >= Ho), which the final slice drops.
            shift = (M - d) if roll_like_jnp else d
            y = pltpu.roll(y, shift, axis=0)
        acc = acc + y
    acc = acc + b_ref[...]                        # (1, CP) broadcasts over rows
    out = acc.reshape(bb, H, W, CP)[:, :Ho, :Wo, :]
    o_ref[...] = out.astype(o_ref.dtype)


def concat_conv2d_v2(t, x_nchw, weight_oihw, bias):
    """Forward pass of ConcatConv2d_v2 (PyTorch NCHW in / NCHW out)."""
    B, cin_x, H, W = x_nchw.shape
    Cout = weight_oihw.shape[0]
    Ho, Wo = H - (KSIZE - 1), W - (KSIZE - 1)
    CP = ((Cout + LANE - 1) // LANE) * LANE       # lane-dense padded out channels

    f32 = jnp.float32
    w = weight_oihw.astype(f32)
    w_time = w[:, :EMBED_DIM]                     # (Cout, 64, 3, 3)
    w_x = w[:, EMBED_DIM:]                        # (Cout, Cin,  3, 3)

    # Fold the spatially-constant time-encoding channels into the bias.
    emb = _time_embedding_vec(t)                  # (64,)
    bias_eff = bias.astype(f32) + jnp.einsum(
        'i,oikl->o', emb, w_time, precision=jax.lax.Precision.HIGHEST)

    # (Cout, Cin, kh, kw) -> (kh, kw, Cin, Cout) -> (kh, kw*Cin + c, Cout), pad Cout.
    w3 = jnp.transpose(w_x, (2, 3, 1, 0)).reshape(KSIZE, KSIZE * cin_x, Cout)
    w3 = jnp.pad(w3, ((0, 0), (0, 0), (0, CP - Cout)))
    b_pad = jnp.pad(bias_eff, (0, CP - Cout)).reshape(1, CP)

    # NCHW -> NHWC, then pack the 3 kw-shifted copies into the channel axis:
    #   x3[b, h, w, kw*Cin + c] = x[b, h, w + kw, c]   (zero past the W edge,
    # which only feeds the invalid wo >= Wo region that the kernel drops).
    x_nhwc = jnp.transpose(x_nchw, (0, 2, 3, 1)).astype(f32)
    x_padw = jnp.pad(x_nhwc, ((0, 0), (0, 0), (0, KSIZE - 1), (0, 0)))
    x3 = jnp.concatenate(
        [x_padw[:, :, kw:kw + W, :] for kw in range(KSIZE)], axis=-1)
    x3_flat = x3.reshape(B * H * W, KSIZE * cin_x)

    # Fold the (small) batch into the matmul M dimension: bb images per step.
    bb = min(B, 8)
    while B % bb:
        bb -= 1
    grid = (B // bb,)
    # Note: for UNet-scale activations a row-tiled (2-row halo) variant would be
    # used so each block also fits v7x's smaller 64 MiB VMEM; whole-image blocks
    # are fine at these shapes and stay well under the 32 MiB scoped limit below.

    kernel = functools.partial(_conv3x3_valid_kernel,
                               roll_like_jnp=_roll_like_jnp_roll())

    out_pad = pl.pallas_call(
        kernel,
        out_shape=jax.ShapeDtypeStruct((B, Ho, Wo, CP), x_nchw.dtype),
        grid=grid,
        in_specs=[
            pl.BlockSpec((bb * H * W, KSIZE * cin_x), lambda i: (i, 0)),
            pl.BlockSpec((KSIZE, KSIZE * cin_x, CP), lambda i: (0, 0, 0)),
            pl.BlockSpec((1, CP), lambda i: (0, 0)),
        ],
        out_specs=pl.BlockSpec((bb, Ho, Wo, CP), lambda i: (i, 0, 0, 0)),
        compiler_params=pltpu.CompilerParams(
            dimension_semantics=("parallel",),
            vmem_limit_bytes=32 * 1024 * 1024),
    )(x3_flat, w3, b_pad)

    out = out_pad[..., :Cout]                     # drop the lane padding
    return jnp.transpose(out, (0, 3, 1, 2))       # NHWC -> NCHW


if __name__ == "__main__":
    B, dim_in, H, W = 2, 4, 16, 16
    dim_out = 8
    cin_total = dim_in + EMBED_DIM

    key = jax.random.PRNGKey(0)
    kx, kw_, kb = jax.random.split(key, 3)
    x = jax.random.normal(kx, (B, dim_in, H, W), dtype=jnp.float32)
    t = jnp.float32(0.5)

    # Deterministic Conv2d-style parameter init (PyTorch uniform bound).
    fan_in = cin_total * KSIZE * KSIZE
    bound = 1.0 / math.sqrt(fan_in)
    weight = jax.random.uniform(kw_, (dim_out, cin_total, KSIZE, KSIZE),
                                minval=-bound, maxval=bound, dtype=jnp.float32)
    bias = jax.random.uniform(kb, (dim_out,),
                              minval=-bound, maxval=bound, dtype=jnp.float32)

    _roll_like_jnp_roll()            # prime the one-time roll-convention probe

    out = jax.jit(concat_conv2d_v2)(t, x, weight, bias)
    out = jax.block_until_ready(out)
    assert out.shape == (B, dim_out, H - 2, W - 2), out.shape

    # Reference: XLA conv on the concatenated (time ++ x) input, PyTorch layout.
    tt = _time_encoding_nchw(t, B, H, W)
    ttx = jnp.concatenate([tt, x], axis=1)
    ref = jax.lax.conv_general_dilated(
        ttx, weight, window_strides=(1, 1), padding="VALID",
        dimension_numbers=("NCHW", "OIHW", "NCHW"),
        precision=jax.lax.Precision.HIGHEST) + bias.reshape(1, -1, 1, 1)
    err = float(jnp.max(jnp.abs(out - ref)))
    assert err < 1e-3, f"max abs error {err}"

    print("KERNEL_OK")
</pallas_src>

<mosaic_0001>
module attributes {stable_mosaic.version = 11 : i64} {
  func.func @probe(%arg0: memref<8x128xf32, #tpu.memory_space<vmem>>, %arg1: memref<8x128xf32, #tpu.memory_space<vmem>>) attributes {dimension_semantics = [], scalar_prefetch = 0 : i64, scratch_operands = 0 : i64, tpu.core_type = #tpu.core_type<tc>} {
    %c0 = arith.constant 0 : index
    %c0_0 = arith.constant 0 : index
    %0 = vector.load %arg0[%c0, %c0_0] : memref<8x128xf32, #tpu.memory_space<vmem>>, vector<8x128xf32>
    %c1_i32 = arith.constant 1 : i32
    %1 = tpu.dynamic_rotate %0 by %c1_i32 dim 0 : vector<8x128xf32>, i32 -> vector<8x128xf32>
    %c0_1 = arith.constant 0 : index
    %c0_2 = arith.constant 0 : index
    %2 = vector.load %arg1[%c0_1, %c0_2] : memref<8x128xf32, #tpu.memory_space<vmem>>, vector<8x128xf32>
    tpu.vector_store %arg1[%c0_1, %c0_2], %1 {strides = array<i32>} : memref<8x128xf32, #tpu.memory_space<vmem>>, vector<8x128xf32>,
    return
  }
}

</mosaic_0001>

<llo_original>
// kernel: tpu_custom_call.1
$region0: #{tpu_custom_call.1}
  #allocation0 [shape = 'u32[]', space=smem, size = 0x4, offset = 0x4, fixed_abs, tag = 'smem constant byte address 0x4 - core index']
  #allocation1 [shape = 'u32[144,128]{1,0:T(1,128)}', space=vmem, size = 0x12000, scoped, tag = 'internal scratch']
  %s0 = inlined_call_operand.hbm [shape: f32[8,128], index: 0, kind: input, shape index: {}]
  %s1 = inlined_call_operand.hbm [shape: f32[8,128], index: 1, kind: output, shape index: {}]
  %s2 = sld [smem:[#allocation0]]
  $region18: #{tpu_custom_call.1} parent=0
    _
  %s4 = ssub.s32 1, %s2
  %s5 = scalar_select 0, %s4, %s2
  $region1: #{tpu_custom_call.1} parent=0
    #allocation2 [shape = 'u8[4096]{0}', space=vmem, size = 0x1000, scoped, tag = 'input window, operand 0, single buffered']
    #allocation3 [shape = 's32[1]{0}', space=sflag, size = 0x4, scoped, tag = 'scoped memory for tpu_custom_call.1']
    #allocation4 [shape = 's32[1]{0}', space=sflag, size = 0x4, scoped, tag = 'scoped memory for tpu_custom_call.1']
    #allocation5 [shape = 'u8[4096]{0}', space=vmem, size = 0x1000, scoped, tag = 'output window, operand 0, single buffered']
    %6 = vsyncpa [#allocation3], 0
    %7 = vsyncpa [#allocation4], 0
    // Predicated region
    $region2: #{tpu_custom_call.1} parent=1 // pred_check
      _
    $region3: #{tpu_custom_call.1} parent=1 // pred_check_branch
      %9 = sbr.rel (0) target = $region5
    $region4: #{tpu_custom_call.1} parent=1 // pred_region
      %s11 = ssub.s32 128, 128
      %12 = vsyncadd [#allocation3], %s11
      %s14 = sshll.u32 [#allocation2], 4
      %s15 = int_to_ptr.vmem [resolvable:$true] %s14
      %17 = dma.hbm_to_vmem [thread:$0]  %s0, 128, %s15, [#allocation3]
    $region5: #{tpu_custom_call.1} parent=1 // pred_fallthru
      _
    // Predicated region
    $region6: #{tpu_custom_call.1} parent=1 // pred_check
      _
    $region7: #{tpu_custom_call.1} parent=1 // pred_check_branch
      %19 = sbr.rel (0) target = $region9
    $region8: #{tpu_custom_call.1} parent=1 // pred_region
      %20 = dma.done [#allocation3], 128
    $region9: #{tpu_custom_call.1} parent=1 // pred_fallthru
      _
    %v21 = vld [vmem:[#allocation2] sm:$0xff]
    %v22 = vrot.slane %v21, 7
    %23 = vst [vmem:[#allocation5] sm:$0xff] %v22
    // Predicated region
    $region10: #{tpu_custom_call.1} parent=1 // pred_check
      _
    $region11: #{tpu_custom_call.1} parent=1 // pred_check_branch
      %25 = sbr.rel (0) target = $region13
    $region12: #{tpu_custom_call.1} parent=1 // pred_region
      %s27 = ssub.s32 128, 128
      %28 = vsyncadd [#allocation4], %s27
      %s30 = sshll.u32 [#allocation5], 4
      %s31 = int_to_ptr.vmem [resolvable:$true] %s30
      %33 = dma.vmem_to_hbm [thread:$0]  %s31, 128, %s1, [#allocation4]
    $region13: #{tpu_custom_call.1} parent=1 // pred_fallthru
      _
    // Predicated region
    $region14: #{tpu_custom_call.1} parent=1 // pred_check
      _
    $region15: #{tpu_custom_call.1} parent=1 // pred_check_branch
      %35 = sbr.rel (0) target = $region17
    $region16: #{tpu_custom_call.1} parent=1 // pred_region
      %36 = dma.done [#allocation4], 128
    $region17: #{tpu_custom_call.1} parent=1 // pred_fallthru
      _
    %37 = vsyncpa [#allocation3], 1
    %38 = vsyncpa [#allocation4], 1

</llo_original>
